<compile_context>
chip_gen: v7x
topology: tpu7x:2x2x1
jax: 0.10.0
libtpu: 0.0.40
codegen_flags: <defaults>
</compile_context>

<pallas_src>
import jax
import jax.numpy as jnp
from jax import lax
from jax.experimental import pallas as pl
from jax.experimental.pallas import tpu as pltpu


def _linear_kernel(x_ref,     # VMEM (B, D)   gathered embedding rows (resident)
                   w_ref,     # VMEM (TN, D)  Linear weight tile, (out, in) layout
                   b_ref,     # VMEM (1, TN)  f32 bias tile
                   out_ref):  # VMEM (B, TN)  f32 output tile
    # y_tile = x @ W_tile^T : contract x dim 1 with the weight's "in" dim 1.
    # Mosaic feeds the transposed RHS to the MXU directly (same pattern as
    # q @ k.T in the reference flash-attention kernel) — no wrapper transpose.
    y = lax.dot_general(x_ref[...], w_ref[...],
                        (((1,), (1,)), ((), ())),
                        preferred_element_type=jnp.float32)
    out_ref[...] = (y + b_ref[...]).astype(out_ref.dtype)


def _pick_tile_n(dim, batch, wsize, esize, vmem_budget=40 << 20):
    """Largest lane-aligned output tile that (a) divides D, (b) gives >= 2 grid
    steps when possible (v7x megacore + DMA/compute overlap), (c) fits VMEM."""
    if dim % 128 != 0:
        return dim                          # single full-extent tile

    def fits(tn):
        need = (2 * tn * dim * wsize        # double-buffered weight tile
                + 2 * batch * dim * esize   # resident activations (+ spare buf)
                + 2 * batch * tn * 4        # output tiles
                + 2 * tn * 4)               # bias tiles
        return need <= vmem_budget

    cands = [t for t in range(dim, 0, -128) if dim % t == 0]
    for t in cands:                         # prefer >= 2 grid steps
        if dim // t >= 2 and fits(t):
            return t
    for t in cands:                         # fall back (e.g. dim == 128)
        if fits(t):
            return t
    # TODO(synk): for very large D, add a K grid axis ("arbitrary", last) with
    # an f32 accumulator instead of carrying the full (TN, D) weight slab.
    return 128


@jax.jit
def expert_encoder_forward(expert_id, embedding, weight, bias):
    """Forward of ExpertEncoder: Linear(Embedding(expert_id)).

    expert_id: (B,) int; embedding: (N, D); weight: (D, D) in (out, in) layout
    (exactly as nn.Linear stores it); bias: (D,).  `embedding` and `weight`
    must share a dtype (float32 or bfloat16); output is float32.
    """
    batch = expert_id.shape[0]
    num_experts, dim = embedding.shape
    assert weight.shape == (dim, dim), "Linear weight must be (out=D, in=D)"
    assert embedding.dtype == weight.dtype, "embedding/weight must share a dtype"

    # Embedding lookup: only the B needed rows are read from HBM.  Ids are
    # clamped so a bad id cannot read out-of-bounds (diverges from nn.Embedding
    # only for invalid ids).
    ids = jnp.clip(expert_id.astype(jnp.int32), 0, num_experts - 1)
    x = jnp.take(embedding, ids, axis=0)                  # (B, D), param dtype

    b2 = bias.astype(jnp.float32).reshape(1, dim)

    esize = jnp.dtype(embedding.dtype).itemsize
    wsize = jnp.dtype(weight.dtype).itemsize
    tn = _pick_tile_n(dim, batch, wsize, esize)
    n_tiles = dim // tn

    cost = pl.CostEstimate(
        flops=2 * batch * dim * dim,
        transcendentals=0,
        bytes_accessed=dim * dim * wsize        # weight stream
        + batch * dim * esize                   # gathered rows (once, resident)
        + batch * dim * 4                       # output
        + dim * 4,                              # bias
    )

    # VMEM budget: double-buffered weight/bias/output tiles + resident x + headroom.
    vmem_bytes = (2 * tn * dim * wsize
                  + 2 * batch * dim * esize
                  + 2 * batch * tn * 4
                  + 2 * tn * 4
                  + (4 << 20))
    vmem_bytes = int(min(max(vmem_bytes, 8 << 20), 48 << 20))

    return pl.pallas_call(
        _linear_kernel,
        out_shape=jax.ShapeDtypeStruct((batch, dim), jnp.float32),
        grid=(n_tiles,),
        in_specs=[
            pl.BlockSpec((batch, dim), lambda j: (0, 0)),   # x: same block every step -> resident
            pl.BlockSpec((tn, dim), lambda j: (j, 0)),      # weight tile (output rows)
            pl.BlockSpec((1, tn), lambda j: (0, j)),        # bias tile
        ],
        out_specs=pl.BlockSpec((batch, tn), lambda j: (0, j)),
        compiler_params=pltpu.CompilerParams(
            dimension_semantics=("parallel",),
            vmem_limit_bytes=vmem_bytes),
        cost_estimate=cost,
    )(x, weight, b2)


if __name__ == "__main__":
    # Small shapes consistent with the module (real defaults: expert_dim=512,
    # expert_num=246).  D=256 -> TN=128, grid=(2,), so pipelining/megacore
    # sharding is exercised.
    expert_num = 64
    expert_dim = 256
    batch = 8

    key = jax.random.PRNGKey(0)
    k_emb, k_w, k_b, k_ids = jax.random.split(key, 4)

    # Deterministic synthetic parameters mirroring nn.Embedding + nn.Linear shapes.
    embedding = jax.random.normal(k_emb, (expert_num, expert_dim), jnp.float32)
    bound = 1.0 / jnp.sqrt(expert_dim)
    weight = jax.random.uniform(k_w, (expert_dim, expert_dim), jnp.float32,
                                minval=-bound, maxval=bound)     # (out, in)
    bias = jax.random.uniform(k_b, (expert_dim,), jnp.float32,
                              minval=-bound, maxval=bound)
    expert_id = jax.random.randint(k_ids, (batch,), 0, expert_num, jnp.int32)

    # --- float32 parameter path -------------------------------------------
    out_f32 = jax.block_until_ready(
        expert_encoder_forward(expert_id, embedding, weight, bias))
    ref_f32 = jnp.take(embedding, expert_id, axis=0) @ weight.T + bias
    assert out_f32.shape == (batch, expert_dim)
    assert jnp.allclose(out_f32, ref_f32, atol=1e-2, rtol=1e-2), "f32 mismatch vs reference"

    # --- bfloat16 parameter path (halves the memory-bound weight stream) ---
    emb_bf = embedding.astype(jnp.bfloat16)
    w_bf = weight.astype(jnp.bfloat16)
    out_bf = jax.block_until_ready(
        expert_encoder_forward(expert_id, emb_bf, w_bf, bias))
    ref_bf = (jnp.take(emb_bf, expert_id, axis=0).astype(jnp.float32)
              @ w_bf.astype(jnp.float32).T + bias)
    assert out_bf.dtype == jnp.float32
    assert jnp.allclose(out_bf, ref_bf, atol=2e-2, rtol=2e-2), "bf16 mismatch vs reference"

    print("KERNEL_OK")
</pallas_src>

<mosaic_0001>
module attributes {stable_mosaic.version = 11 : i64} {
  func.func @_linear_kernel(%arg0: i32, %arg1: memref<8x256xf32, #tpu.memory_space<vmem>>, %arg2: memref<128x256xf32, #tpu.memory_space<vmem>>, %arg3: memref<1x128xf32, #tpu.memory_space<vmem>>, %arg4: memref<8x128xf32, #tpu.memory_space<vmem>>) attributes {dimension_semantics = [#tpu.dimension_semantics<parallel>], iteration_bounds = array<i64: 2>, scalar_prefetch = 0 : i64, scratch_operands = 0 : i64, tpu.core_type = #tpu.core_type<tc>, window_params = [{pipeline_mode = #tpu.pipeline_mode<synchronous>, transform_indices = @transform_0, window_bounds = array<i64: 8, 256>}, {transform_indices = @transform_1, window_bounds = array<i64: 128, 256>}, {transform_indices = @transform_2, window_bounds = array<i64: 1, 128>}, {transform_indices = @transform_3, window_bounds = array<i64: 8, 128>}]} {
    %c0 = arith.constant 0 : index
    %c0_0 = arith.constant 0 : index
    %0 = vector.load %arg1[%c0, %c0_0] : memref<8x256xf32, #tpu.memory_space<vmem>>, vector<8x256xf32>
    %c0_1 = arith.constant 0 : index
    %c0_2 = arith.constant 0 : index
    %1 = vector.load %arg2[%c0_1, %c0_2] : memref<128x256xf32, #tpu.memory_space<vmem>>, vector<128x256xf32>
    %cst = arith.constant dense<0.000000e+00> : vector<8x128xf32>
    %2 = tpu.matmul %0, %1, %cst {dimension_numbers = #tpu.dot_dimension_numbers<[1], [1], [0], [0], [0, 0, 1, 0], [], []>} : vector<8x256xf32>, vector<128x256xf32>, vector<8x128xf32> -> vector<8x128xf32>
    %c0_3 = arith.constant 0 : index
    %c0_4 = arith.constant 0 : index
    %3 = vector.load %arg3[%c0_3, %c0_4] : memref<1x128xf32, #tpu.memory_space<vmem>>, vector<1x128xf32>
    %4 = vector.broadcast %3 : vector<1x128xf32> to vector<8x128xf32>
    %5 = arith.addf %2, %4 : vector<8x128xf32>
    %c0_5 = arith.constant 0 : index
    %c0_6 = arith.constant 0 : index
    %6 = vector.load %arg4[%c0_5, %c0_6] : memref<8x128xf32, #tpu.memory_space<vmem>>, vector<8x128xf32>
    tpu.vector_store %arg4[%c0_5, %c0_6], %5 {strides = array<i32>} : memref<8x128xf32, #tpu.memory_space<vmem>>, vector<8x128xf32>,
    return
  }
  func.func @transform_0(%arg0: i32) -> (i32, i32) {
    %c0_i32 = arith.constant 0 : i32
    %c0_i32_0 = arith.constant 0 : i32
    %c0_i32_1 = arith.constant 0 : i32
    return %c0_i32, %c0_i32_0 : i32, i32
  }
  func.func @transform_1(%arg0: i32) -> (i32, i32) {
    %c0_i32 = arith.constant 0 : i32
    %c0_i32_0 = arith.constant 0 : i32
    return %arg0, %c0_i32 : i32, i32
  }
  func.func @transform_2(%arg0: i32) -> (i32, i32) {
    %c0_i32 = arith.constant 0 : i32
    %c0_i32_0 = arith.constant 0 : i32
    return %c0_i32, %arg0 : i32, i32
  }
  func.func @transform_3(%arg0: i32) -> (i32, i32) {
    %c0_i32 = arith.constant 0 : i32
    %c0_i32_0 = arith.constant 0 : i32
    return %c0_i32, %arg0 : i32, i32
  }
}

</mosaic_0001>

<llo_original>
// kernel: expert_encoder_forward.1
$region0: #{expert_encoder_forward.1}
  #allocation0 [shape = 'u32[]', space=smem, size = 0x4, offset = 0x4, fixed_abs, tag = 'smem constant byte address 0x4 - core index']
  #allocation1 [shape = 'u32[144,128]{1,0:T(1,128)}', space=vmem, size = 0x12000, scoped, tag = 'internal scratch']
  %s0 = inlined_call_operand.vmem [shape: f32[8,256], index: 0, kind: input, shape index: {}]
  %s1 = inlined_call_operand.hbm [shape: f32[256,256], index: 1, kind: input, shape index: {}]
  %s2 = inlined_call_operand.vmem [shape: f32[1,256], index: 2, kind: input, shape index: {}]
  %s3 = inlined_call_operand.hbm [shape: f32[8,256], index: 3, kind: output, shape index: {}]
  %s4 = sld [smem:[#allocation0]]
  $region49: #{expert_encoder_forward.1} parent=0
    _
  %s6 = ssub.s32 1, %s4
  %s7 = scalar_select 0, %s6, %s4
  $region1: #{expert_encoder_forward.1} parent=0
    #allocation2 [shape = 'u8[262144]{0}', space=vmem, size = 0x40000, scoped, tag = 'input window, operand 1']
    #allocation3 [shape = 's32[2]{0}', space=sflag, size = 0x8, scoped, tag = 'scoped memory for expert_encoder_forward.1']
    #allocation4 [shape = 's32[2]{0}', space=sflag, size = 0x8, scoped, tag = 'scoped memory for expert_encoder_forward.1']
    #allocation5 [shape = 'u8[8192]{0}', space=vmem, size = 0x2000, scoped, tag = 'output window, operand 0']
    %8 = vsyncpa [#allocation3], 0
    %s9 = scalar_lea.sflag [#allocation3], 1
    %10 = vsyncpa %s9, 0
    %11 = vsyncpa [#allocation4], 0
    %s12 = scalar_lea.sflag [#allocation4], 1
    %13 = vsyncpa %s12, 0
    loop: start=0, step=1, limit=4
    $region2: #{expert_encoder_forward.1} parent=1 // loop_pre_header
      _
    $region3: #{expert_encoder_forward.1} parent=1 // loop_header
      %s15 = sphi 0, %s19
      %p16 = scmp.ge.s32.totalorder %s15, 4
      %s23 = sphi 0, %s23
      %s25 = sphi 0, %s23
      %s26 = sphi 0, %s25
      %s40 = sphi 0, %s26
      %s46 = sphi 0, %s48
      %s49 = sphi 0, %s46
      %s50 = sphi 0, %s49
      %s66 = sphi 0, %s50
      %s72 = sphi 0, %s74
      %s75 = sphi 0, %s72
      %s76 = sphi 0, %s75
      %s92 = sphi 0, %s76
      %s98 = sphi 0, %s100
      %s101 = sphi 0, %s98
      %s102 = sphi 0, %s101
      %s118 = sphi 0, %s102
    $region4: #{expert_encoder_forward.1} parent=1 // loop_header_branch
      %18 = sbr.rel (%p16) target = $region8
    $region5: #{expert_encoder_forward.1} parent=1 // loop_body
      %s20 = ssub.s32 %s15, 1
      %s21 = ssub.s32 %s15, 2
      %s22 = sadd.s32 %s15, 1
      %s24 = sadd.s32 %s23, 1
      %p27 = scmp.eq.s32.totalorder %s15, 1
      %p28 = scmp.ne.s32.totalorder %s23, %s25
      %p29 = scmp.eq.s32.totalorder %s15, 0
      %p30 = por %p28, %p29
      %p31 = scmp.ne.s32.totalorder %s23, %s25
      %p32 = scmp.eq.s32.totalorder %s20, 1
      %p33 = por %p31, %p32
      %p34 = scmp.ne.s32.totalorder %s25, %s26
      %p35 = scmp.eq.s32.totalorder %s20, 0
      %p36 = por %p34, %p35
      %p37 = scmp.ne.s32.totalorder %s25, %s26
      %p38 = scmp.eq.s32.totalorder %s21, 1
      %p39 = por %p37, %p38
      %p41 = scmp.ne.s32.totalorder %s26, %s40
      %p42 = scmp.eq.s32.totalorder %s21, 0
      %p43 = por %p41, %p42
      %s44 = ssub.s32 %s15, %s22
      %p45 = scmp.eq.s32.totalorder %s44, 0
      %s47 = sadd.s32 %s46, 1
      %s48 = scalar_select %p45, %s46, %s47
      %p51 = pneg %p45
      %p52 = scmp.eq.s32.totalorder %s15, 1
      %p53 = por %p51, %p52
      %p54 = scmp.ne.s32.totalorder %s46, %s49
      %p55 = scmp.eq.s32.totalorder %s15, 0
      %p56 = por %p54, %p55
      %p57 = scmp.ne.s32.totalorder %s46, %s49
      %p58 = scmp.eq.s32.totalorder %s20, 1
      %p59 = por %p57, %p58
      %p60 = scmp.ne.s32.totalorder %s49, %s50
      %p61 = scmp.eq.s32.totalorder %s20, 0
      %p62 = por %p60, %p61
      %p63 = scmp.ne.s32.totalorder %s49, %s50
      %p64 = scmp.eq.s32.totalorder %s21, 1
      %p65 = por %p63, %p64
      %p67 = scmp.ne.s32.totalorder %s50, %s66
      %p68 = scmp.eq.s32.totalorder %s21, 0
      %p69 = por %p67, %p68
      %s70 = ssub.s32 %s15, %s22
      %p71 = scmp.eq.s32.totalorder %s70, 0
      %s73 = sadd.s32 %s72, 1
      %s74 = scalar_select %p71, %s72, %s73
      %p77 = pneg %p71
      %p78 = scmp.eq.s32.totalorder %s15, 1
      %p79 = por %p77, %p78
      %p80 = scmp.ne.s32.totalorder %s72, %s75
      %p81 = scmp.eq.s32.totalorder %s15, 0
      %p82 = por %p80, %p81
      %p83 = scmp.ne.s32.totalorder %s72, %s75
      %p84 = scmp.eq.s32.totalorder %s20, 1
      %p85 = por %p83, %p84
      %p86 = scmp.ne.s32.totalorder %s75, %s76
      %p87 = scmp.eq.s32.totalorder %s20, 0
      %p88 = por %p86, %p87
      %p89 = scmp.ne.s32.totalorder %s75, %s76
      %p90 = scmp.eq.s32.totalorder %s21, 1
      %p91 = por %p89, %p90
      %p93 = scmp.ne.s32.totalorder %s76, %s92
      %p94 = scmp.eq.s32.totalorder %s21, 0
      %p95 = por %p93, %p94
      %s96 = ssub.s32 %s15, %s22
      %p97 = scmp.eq.s32.totalorder %s96, 0
      %s99 = sadd.s32 %s98, 1
      %s100 = scalar_select %p97, %s98, %s99
      %p103 = pneg %p97
      %p104 = scmp.eq.s32.totalorder %s15, 1
      %p105 = por %p103, %p104
      %p106 = scmp.ne.s32.totalorder %s98, %s101
      %p107 = scmp.eq.s32.totalorder %s15, 0
      %p108 = por %p106, %p107
      %p109 = scmp.ne.s32.totalorder %s98, %s101
      %p110 = scmp.eq.s32.totalorder %s20, 1
      %p111 = por %p109, %p110
      %p112 = scmp.ne.s32.totalorder %s101, %s102
      %p113 = scmp.eq.s32.totalorder %s20, 0
      %p114 = por %p112, %p113
      %p115 = scmp.ne.s32.totalorder %s101, %s102
      %p116 = scmp.eq.s32.totalorder %s21, 1
      %p117 = por %p115, %p116
      %p119 = scmp.ne.s32.totalorder %s102, %s118
      %p120 = scmp.eq.s32.totalorder %s21, 0
      %p121 = por %p119, %p120
      %p122 = scmp.le.s32.totalorder 1, %s15
      %p123 = scmp.lt.s32.totalorder %s15, 3
      %p124 = pnand %p122, %p123
      %p125 = pneg %p124
      // Predicated region
      $region9: #{expert_encoder_forward.1} parent=5 // pred_check
        _
      $region10: #{expert_encoder_forward.1} parent=5 // pred_check_branch
        %127 = sbr.rel (%p124) target = $region12
      $region11: #{expert_encoder_forward.1} parent=5 // pred_region
        %s128 = ssub.s32 %s15, 1
        // Predicated region
        $region13: #{expert_encoder_forward.1} parent=11 // pred_check
          %p129 = pneg %p36
        $region14: #{expert_encoder_forward.1} parent=11 // pred_check_branch
          %131 = sbr.rel (%p129) target = $region16
        $region15: #{expert_encoder_forward.1} parent=11 // pred_region
          _
        $region16: #{expert_encoder_forward.1} parent=11 // pred_fallthru
          _
      $region12: #{expert_encoder_forward.1} parent=5 // pred_fallthru
        _
      %p132 = scmp.lt.s32.totalorder %s15, 2
      // Predicated region
      $region17: #{expert_encoder_forward.1} parent=5 // pred_check
        %p133 = pneg %p132
      $region18: #{expert_encoder_forward.1} parent=5 // pred_check_branch
        %135 = sbr.rel (%p133) target = $region20
      $region19: #{expert_encoder_forward.1} parent=5 // pred_region
        // Predicated region
        $region21: #{expert_encoder_forward.1} parent=19 // pred_check
          %p136 = pneg %p56
        $region22: #{expert_encoder_forward.1} parent=19 // pred_check_branch
          %138 = sbr.rel (%p136) target = $region24
        $region23: #{expert_encoder_forward.1} parent=19 // pred_region
          %s139 = sand.u32 %s46, 1
          %s140 = scalar_lea.sflag [#allocation3], %s139
          %s141 = sand.u32 %s46, 1
          %s142 = smul.addr %s141, 256
          %s143 = scalar_lea.vmem [#allocation2], %s142
          %s144 = smul.u32 16, %s15
          %s146 = ssub.s32 4096, 4096
          %147 = vsyncadd %s140, %s146
          %s148 = smul.addr %s144, 2
          %s149 = smul.addr %s148, 128
          %s150 = scalar_lea.hbm %s1, %s149
          %s151 = sshll.u32 %s143, 4
          %s152 = int_to_ptr.vmem [resolvable:$true] %s151
          %157 = dma.hbm_to_vmem [thread:$0]  %s150, 4096, %s152, %s140, 256, 256, 16
        $region24: #{expert_encoder_forward.1} parent=19 // pred_fallthru
          _
        // Predicated region
        $region25: #{expert_encoder_forward.1} parent=19 // pred_check
          %p158 = pneg %p82
        $region26: #{expert_encoder_forward.1} parent=19 // pred_check_branch
          %160 = sbr.rel (%p158) target = $region28
        $region27: #{expert_encoder_forward.1} parent=19 // pred_region
          %p161 = scmp.lt.s32.totalorder %s15, 1
          %s162 = scalar_select %p161, %s15, 1
          %s163 = scalar_lea.vmem %s2, %s162
        $region28: #{expert_encoder_forward.1} parent=19 // pred_fallthru
          _
      $region20: #{expert_encoder_forward.1} parent=5 // pred_fallthru
        _
      %p164 = scmp.le.s32.totalorder 1, %s15
      %p165 = scmp.lt.s32.totalorder %s15, 3
      %p166 = pnand %p164, %p165
      %p167 = pneg %p166
      // Predicated region
      $region29: #{expert_encoder_forward.1} parent=5 // pred_check
        _
      $region30: #{expert_encoder_forward.1} parent=5 // pred_check_branch
        %169 = sbr.rel (%p166) target = $region32
      $region31: #{expert_encoder_forward.1} parent=5 // pred_region
        %s170 = ssub.s32 %s15, 1
        %s171 = sand.u32 %s49, 1
        %s172 = scalar_lea.sflag [#allocation3], %s171
        %s173 = sand.u32 %s49, 1
        %s174 = smul.addr %s173, 256
        %s175 = scalar_lea.vmem [#allocation2], %s174
        // Predicated region
        $region33: #{expert_encoder_forward.1} parent=31 // pred_check
          %p176 = pneg %p62
        $region34: #{expert_encoder_forward.1} parent=31 // pred_check_branch
          %178 = sbr.rel (%p176) target = $region36
        $region35: #{expert_encoder_forward.1} parent=31 // pred_region
          %179 = dma.done %s172, 4096
        $region36: #{expert_encoder_forward.1} parent=31 // pred_fallthru
          _
        %p180 = pneg %p36
        %p181 = pneg %p33
        %s182 = sand.u32 %s49, 1
        %s183 = scalar_lea.sflag [#allocation3], %s182
        %s184 = sand.u32 %s49, 1
        %s185 = smul.addr %s184, 256
        %s186 = scalar_lea.vmem [#allocation2], %s185
        %p187 = pneg %p62
        %p188 = pneg %p59
        %p189 = scmp.lt.s32.totalorder %s20, 1
        %s190 = scalar_select %p189, %s20, 1
        %s191 = scalar_lea.vmem %s2, %s190
        %p192 = pneg %p88
        %p193 = pneg %p85
        %p194 = pneg %p114
        %p195 = pneg %p111
        %s196 = sand.u32 %s101, 1
        %s197 = scalar_lea.sflag [#allocation4], %s196
        %s198 = sand.u32 %s101, 1
        %s199 = smul.addr %s198, 8
        %s200 = scalar_lea.vmem [#allocation5], %s199
        %s201 = smul.u32 16, %s20
        %p202 = scmp.lt.s32.totalorder %s20, 1
        %s203 = scalar_select %p202, %s20, 1
        %s204 = scalar_lea.vmem %s2, %s203
        %v205 = vld [vmem:[%s0] sm:$0xff]
        %v206 = vld [vmem:[%s0 + $0x8] sm:$0xff]
        %v207 = vld [vmem:[%s175] sm:$0xff]
        %v208 = vld [vmem:[%s175 + $0x8] sm:$0xff]
        %v209 = vld [vmem:[%s175 + $0x10] sm:$0xff]
        %v210 = vld [vmem:[%s175 + $0x18] sm:$0xff]
        %v211 = vld [vmem:[%s175 + $0x20] sm:$0xff]
        %v212 = vld [vmem:[%s175 + $0x28] sm:$0xff]
        %v213 = vld [vmem:[%s175 + $0x30] sm:$0xff]
        %v214 = vld [vmem:[%s175 + $0x38] sm:$0xff]
        %v215 = vld [vmem:[%s175 + $0x40] sm:$0xff]
        %v216 = vld [vmem:[%s175 + $0x48] sm:$0xff]
        %v217 = vld [vmem:[%s175 + $0x50] sm:$0xff]
        %v218 = vld [vmem:[%s175 + $0x58] sm:$0xff]
        %v219 = vld [vmem:[%s175 + $0x60] sm:$0xff]
        %v220 = vld [vmem:[%s175 + $0x68] sm:$0xff]
        %v221 = vld [vmem:[%s175 + $0x70] sm:$0xff]
        %v222 = vld [vmem:[%s175 + $0x78] sm:$0xff]
        %v223 = vld [vmem:[%s175 + $0x80] sm:$0xff]
        %v224 = vld [vmem:[%s175 + $0x88] sm:$0xff]
        %v225 = vld [vmem:[%s175 + $0x90] sm:$0xff]
        %v226 = vld [vmem:[%s175 + $0x98] sm:$0xff]
        %v227 = vld [vmem:[%s175 + $0xa0] sm:$0xff]
        %v228 = vld [vmem:[%s175 + $0xa8] sm:$0xff]
        %v229 = vld [vmem:[%s175 + $0xb0] sm:$0xff]
        %v230 = vld [vmem:[%s175 + $0xb8] sm:$0xff]
        %v231 = vld [vmem:[%s175 + $0xc0] sm:$0xff]
        %v232 = vld [vmem:[%s175 + $0xc8] sm:$0xff]
        %v233 = vld [vmem:[%s175 + $0xd0] sm:$0xff]
        %v234 = vld [vmem:[%s175 + $0xd8] sm:$0xff]
        %v235 = vld [vmem:[%s175 + $0xe0] sm:$0xff]
        %v236 = vld [vmem:[%s175 + $0xe8] sm:$0xff]
        %v237 = vld [vmem:[%s175 + $0xf0] sm:$0xff]
        %v238 = vld [vmem:[%s175 + $0xf8] sm:$0xff]
        %v239 = vld [vmem:[%s204] sm:$0x1]
        %v241 = vlaneseq
        %v242 = vshrl.u32 %v241, 7
        %v243 = vsub.s32 0, %v242
        %v244 = vrot.slane %v239, %v243
        %246 = vmatprep.subr.mxu0 %v208
        %247 = vmatpush1.xpose.msra.mxu0 %v207
        %248 = vmatprep.subr.mxu0 %v210
        %249 = vmatpush1.xpose.msra.mxu0 %v209
        %250 = vmatprep.subr.mxu0 %v212
        %251 = vmatpush1.xpose.msra.mxu0 %v211
        %252 = vmatprep.subr.mxu0 %v214
        %253 = vmatpush1.xpose.msra.mxu0 %v213
        %254 = vmatprep.subr.mxu0 %v216
        %255 = vmatpush1.xpose.msra.mxu0 %v215
        %256 = vmatprep.subr.mxu0 %v218
        %257 = vmatpush1.xpose.msra.mxu0 %v217
        %258 = vmatprep.subr.mxu0 %v220
        %259 = vmatpush1.xpose.msra.mxu0 %v219
        %260 = vmatprep.subr.mxu0 %v222
        %261 = vmatpush1.xpose.msra.mxu0 %v221
        %262 = vmatprep.subr.mxu0 %v224
        %263 = vmatpush1.xpose.msra.mxu0 %v223
        %264 = vmatprep.subr.mxu0 %v226
        %265 = vmatpush1.xpose.msra.mxu0 %v225
        %266 = vmatprep.subr.mxu0 %v228
        %267 = vmatpush1.xpose.msra.mxu0 %v227
        %268 = vmatprep.subr.mxu0 %v230
        %269 = vmatpush1.xpose.msra.mxu0 %v229
        %270 = vmatprep.subr.mxu0 %v232
        %271 = vmatpush1.xpose.msra.mxu0 %v231
        %272 = vmatprep.subr.mxu0 %v234
        %273 = vmatpush1.xpose.msra.mxu0 %v233
        %274 = vmatprep.subr.mxu0 %v236
        %275 = vmatpush1.xpose.msra.mxu0 %v235
        %276 = vmatprep.subr.mxu0 %v238
        %277 = vmatpush1.xpose.msra.mxu0 %v237
        %278 = vmatprep.subr.mxu0 0.0
        %279 = vmatpush1.xpose.msra.mxu0 0.0
        %280 = vmatprep.subr.mxu0 0.0
        %281 = vmatpush1.xpose.msra.mxu0 0.0
        %282 = vmatprep.subr.mxu0 0.0
        %283 = vmatpush1.xpose.msra.mxu0 0.0
        %284 = vmatprep.subr.mxu0 0.0
        %285 = vmatpush1.xpose.msra.mxu0 0.0
        %286 = vmatprep.subr.mxu0 0.0
        %287 = vmatpush1.xpose.msra.mxu0 0.0
        %288 = vmatprep.subr.mxu0 0.0
        %289 = vmatpush1.xpose.msra.mxu0 0.0
        %290 = vmatprep.subr.mxu0 0.0
        %291 = vmatpush1.xpose.msra.mxu0 0.0
        %292 = vmatprep.subr.mxu0 0.0
        %293 = vmatpush1.xpose.msra.mxu0 0.0
        %294 = vmatprep.subr.mxu0 0.0
        %295 = vmatpush1.xpose.msra.mxu0 0.0
        %296 = vmatprep.subr.mxu0 0.0
        %297 = vmatpush1.xpose.msra.mxu0 0.0
        %298 = vmatprep.subr.mxu0 0.0
        %299 = vmatpush1.xpose.msra.mxu0 0.0
        %300 = vmatprep.subr.mxu0 0.0
        %301 = vmatpush1.xpose.msra.mxu0 0.0
        %302 = vmatprep.subr.mxu0 0.0
        %303 = vmatpush1.xpose.msra.mxu0 0.0
        %304 = vmatprep.subr.mxu0 0.0
        %305 = vmatpush1.xpose.msra.mxu0 0.0
        %306 = vmatprep.subr.mxu0 0.0
        %307 = vmatpush1.xpose.msra.mxu0 0.0
        %308 = vmatprep.subr.mxu0 0.0
        %309 = vmatpush1.xpose.msra.mxu0 0.0
        %310 = vmatprep.mubr.f32.mxu0 %v206
        %311 = vmatmul.mubr.f32.gmra.mrb[0].mxu0 %v205
        %v312 = vpop.f32.mrb[0].mxu0
        %v313 = vadd.f32 %v244, %v312
        %v314 = vpop.f32.mrb[0].mxu0
        %315 = vdwg.mxu0
        %316 = vst [vmem:[%s200] sm:$0xff] %v313
        %s317 = sand.u32 %s101, 1
        %s318 = scalar_lea.sflag [#allocation4], %s317
        %s319 = sand.u32 %s101, 1
        %s320 = smul.addr %s319, 8
        %s321 = scalar_lea.vmem [#allocation5], %s320
        // Predicated region
        $region37: #{expert_encoder_forward.1} parent=31 // pred_check
          %p322 = pneg %p111
        $region38: #{expert_encoder_forward.1} parent=31 // pred_check_branch
          %324 = sbr.rel (%p322) target = $region40
        $region39: #{expert_encoder_forward.1} parent=31 // pred_region
          %s326 = ssub.s32 128, 128
          %327 = vsyncadd %s318, %s326
          %s328 = smul.addr %s20, 128
          %s329 = scalar_lea.hbm %s3, %s328
          %s331 = sshll.u32 %s321, 4
          %s332 = int_to_ptr.vmem [resolvable:$true] %s331
          %334 = dma.vmem_to_hbm [thread:$0]  %s332, 128, %s329, %s318
        $region40: #{expert_encoder_forward.1} parent=31 // pred_fallthru
          _
      $region32: #{expert_encoder_forward.1} parent=5 // pred_fallthru
        _
      %p335 = scmp.le.s32.totalorder 2, %s15
      // Predicated region
      $region41: #{expert_encoder_forward.1} parent=5 // pred_check
        %p336 = pneg %p335
      $region42: #{expert_encoder_forward.1} parent=5 // pred_check_branch
        %338 = sbr.rel (%p336) target = $region44
      $region43: #{expert_encoder_forward.1} parent=5 // pred_region
        %s339 = ssub.s32 %s15, 2
        // Predicated region
        $region45: #{expert_encoder_forward.1} parent=43 // pred_check
          %p340 = pneg %p117
        $region46: #{expert_encoder_forward.1} parent=43 // pred_check_branch
          %342 = sbr.rel (%p340) target = $region48
        $region47: #{expert_encoder_forward.1} parent=43 // pred_region
          %s343 = sand.u32 %s102, 1
          %s344 = scalar_lea.sflag [#allocation4], %s343
          %s345 = sand.u32 %s102, 1
          %s346 = smul.addr %s345, 8
          %s347 = scalar_lea.vmem [#allocation5], %s346
          %348 = dma.done %s344, 128
        $region48: #{expert_encoder_forward.1} parent=43 // pred_fallthru
          _
      $region44: #{expert_encoder_forward.1} parent=5 // pred_fallthru
        _
    $region6: #{expert_encoder_forward.1} parent=1 // loop_footer
      %s19 = sadd.s32 1, %s15
    $region7: #{expert_encoder_forward.1} parent=1 // loop_footer_branch
      %14 = sbr.rel target = $region3
    $region8: #{expert_encoder_forward.1} parent=1 // loop_exit
      _
    %349 = vsyncpa [#allocation3], 1
    %s350 = scalar_lea.sflag [#allocation3], 1
    %351 = vsyncpa %s350, 1
    %352 = vsyncpa [#allocation4], 1
    %s353 = scalar_lea.sflag [#allocation4], 1
    %354 = vsyncpa %s353, 1

</llo_original>
